<compile_context>
chip_gen: v7x
topology: tpu7x:2x2x1
jax: 0.10.0
libtpu: 0.0.40
codegen_flags: <defaults>
</compile_context>

<pallas_src>
import math
import jax
import jax.numpy as jnp
from jax.experimental import pallas as pl
from jax.experimental.pallas import tpu as pltpu

EXTRACTED_FEATURE_DIM = 128
HIDDEN = 100
HIDDEN_PAD = 128          # pad hidden dim to full lane width for the matmuls
CLASS_NUM = 4
BN_EPS = 1e-5
TB_MAX = 1024             # batch tile (rows); ~2 MiB double-buffered at f32


def _cdiv(a, b):
    return -(-a // b)


def _round_up(a, b):
    return _cdiv(a, b) * b


def classifier_kernel(x_ref, w1_ref, b1_ref, w2_ref, b2_ref, emb_ref, logit_ref):
    # fc1 with BN folded in:  relu(x @ w1' + b1').  x/w1 may be bf16; acc is f32.
    h = jnp.dot(x_ref[...], w1_ref[...], preferred_element_type=jnp.float32)
    h = jnp.maximum(h + b1_ref[...], jnp.float32(0.0))            # (TB, 128) f32
    # Store only the real 100 hidden columns (masked vst; avoids a post-kernel
    # HBM slice pass).  Padded columns 100..127 are exactly zero anyway.
    emb_ref[...] = h[:, :HIDDEN]
    # fc2: Linear(128(padded) -> class_num); padded rows of w2 are zero.
    logit = jnp.dot(h, w2_ref[...], preferred_element_type=jnp.float32)
    logit_ref[...] = logit + b2_ref[...]


def fold_and_pad_params(params):
    """Fold eval-mode BatchNorm into fc1 and zero-pad hidden dim 100 -> 128."""
    w1, b1, gamma, beta, rmean, rvar, w2, b2 = params
    scale = gamma * jax.lax.rsqrt(rvar + BN_EPS)                # (1, 100)
    w1f = w1 * scale                                            # (128, 100)
    b1f = (b1 - rmean) * scale + beta                           # (1, 100)

    w1p = jnp.zeros((EXTRACTED_FEATURE_DIM, HIDDEN_PAD), jnp.float32)
    w1p = w1p.at[:, :HIDDEN].set(w1f)
    b1p = jnp.zeros((1, HIDDEN_PAD), jnp.float32).at[:, :HIDDEN].set(b1f)
    # zero-padded w2 rows => padded emb columns (0 after ReLU) add nothing
    w2p = jnp.zeros((HIDDEN_PAD, CLASS_NUM), jnp.float32).at[:HIDDEN, :].set(w2)
    return w1p, b1p, w2p, b2


def classifier_forward(x, folded_params, *, mxu_bf16=False):
    """x: (B, 128).  Returns (fc1_emb (B, 100) f32, logit (B, CLASS_NUM) f32).

    mxu_bf16: feed the fc1 matmul bf16 operands (f32 accumulation).  Best when
    the caller already stores x as bf16 so its HBM read halves (v6e/v7x win).
    """
    w1p, b1p, w2p, b2 = folded_params
    B = x.shape[0]

    if mxu_bf16:
        w1p = w1p.astype(jnp.bfloat16)
        if x.dtype != jnp.bfloat16:
            x = x.astype(jnp.bfloat16)   # ideally the caller ships bf16 already

    # Batch tile: multiple of 8 (f32 sublane), capped at TB_MAX, and sized so
    # there are >= 2 grid steps whenever B > 8 (lets the "parallel" batch axis
    # use both TensorCores on v7x).  No padding of x: the tail block, if
    # partial, has its writes masked by Pallas.
    TB = min(TB_MAX, max(8, _round_up(_cdiv(B, 2), 8)))
    grid = (_cdiv(B, TB),)

    x_bytes = B * EXTRACTED_FEATURE_DIM * x.dtype.itemsize
    w_bytes = (w1p.size * w1p.dtype.itemsize + b1p.size * 4
               + w2p.size * 4 + b2.size * 4)
    out_bytes = B * (HIDDEN + CLASS_NUM) * 4
    cost = pl.CostEstimate(
        flops=2 * B * EXTRACTED_FEATURE_DIM * HIDDEN_PAD
              + 2 * B * HIDDEN_PAD * CLASS_NUM,
        transcendentals=0,
        bytes_accessed=x_bytes + w_bytes + out_bytes,
    )

    emb, logit = pl.pallas_call(
        classifier_kernel,
        out_shape=(
            jax.ShapeDtypeStruct((B, HIDDEN), jnp.float32),
            jax.ShapeDtypeStruct((B, CLASS_NUM), jnp.float32),
        ),
        grid=grid,
        in_specs=[
            pl.BlockSpec((TB, EXTRACTED_FEATURE_DIM), lambda i: (i, 0)),
            # weights/biases: constant index_map => VMEM-resident across steps
            pl.BlockSpec((EXTRACTED_FEATURE_DIM, HIDDEN_PAD), lambda i: (0, 0)),
            pl.BlockSpec((1, HIDDEN_PAD), lambda i: (0, 0)),
            pl.BlockSpec((HIDDEN_PAD, CLASS_NUM), lambda i: (0, 0)),
            pl.BlockSpec((1, CLASS_NUM), lambda i: (0, 0)),
        ],
        out_specs=(
            pl.BlockSpec((TB, HIDDEN), lambda i: (i, 0)),      # 100 == full dim
            pl.BlockSpec((TB, CLASS_NUM), lambda i: (i, 0)),
        ),
        compiler_params=pltpu.CompilerParams(
            dimension_semantics=("parallel",)),
        cost_estimate=cost,
    )(x, w1p, b1p, w2p, b2)

    return emb, logit


def init_params(key):
    """Deterministic synthetic parameters with the shapes implied by __init__."""
    ks = jax.random.split(key, 8)
    # Linear(128, 100): torch weight (100, 128) -> stored transposed (128, 100)
    bound1 = 1.0 / math.sqrt(EXTRACTED_FEATURE_DIM)
    w1 = jax.random.uniform(ks[0], (EXTRACTED_FEATURE_DIM, HIDDEN),
                            jnp.float32, -bound1, bound1)
    b1 = jax.random.uniform(ks[1], (1, HIDDEN), jnp.float32, -bound1, bound1)
    # BatchNorm1d(100, affine=True) params + running stats (synthetic, nontrivial)
    gamma = 1.0 + 0.1 * jax.random.normal(ks[2], (1, HIDDEN), jnp.float32)
    beta = 0.1 * jax.random.normal(ks[3], (1, HIDDEN), jnp.float32)
    rmean = 0.1 * jax.random.normal(ks[4], (1, HIDDEN), jnp.float32)
    rvar = jnp.abs(1.0 + 0.1 * jax.random.normal(ks[5], (1, HIDDEN), jnp.float32))
    # Linear(100, class_num): torch weight (4, 100) -> stored transposed (100, 4)
    bound2 = 1.0 / math.sqrt(HIDDEN)
    w2 = jax.random.uniform(ks[6], (HIDDEN, CLASS_NUM),
                            jnp.float32, -bound2, bound2)
    b2 = jax.random.uniform(ks[7], (1, CLASS_NUM), jnp.float32, -bound2, bound2)
    return (w1, b1, gamma, beta, rmean, rvar, w2, b2)


def reference_forward(x, params):
    """Pure-JAX reference (unfolded params) for correctness check."""
    w1, b1, gamma, beta, rmean, rvar, w2, b2 = params
    h = x @ w1 + b1
    h = (h - rmean) / jnp.sqrt(rvar + BN_EPS) * gamma + beta
    emb = jnp.maximum(h, 0.0)
    logit = emb @ w2 + b2
    return emb, logit


if __name__ == "__main__":
    key = jax.random.PRNGKey(0)
    pkey, xkey = jax.random.split(key)
    params = init_params(pkey)
    folded = fold_and_pad_params(params)

    # --- small aligned batch, f32 path ---
    B = 8
    x = jax.random.normal(xkey, (B, EXTRACTED_FEATURE_DIM), jnp.float32)
    emb, logit = jax.block_until_ready(classifier_forward(x, folded))
    emb_ref, logit_ref = reference_forward(x, params)
    assert emb.shape == (B, HIDDEN) and logit.shape == (B, CLASS_NUM)
    assert jnp.allclose(emb, emb_ref, atol=1e-4, rtol=1e-4)
    assert jnp.allclose(logit, logit_ref, atol=1e-4, rtol=1e-4)

    # --- ragged batch (B not a multiple of TB): exercises masked tail block ---
    Br = 13
    xr = jax.random.normal(jax.random.PRNGKey(1), (Br, EXTRACTED_FEATURE_DIM),
                           jnp.float32)
    emb_r, logit_r = jax.block_until_ready(classifier_forward(xr, folded))
    emb_rr, logit_rr = reference_forward(xr, params)
    assert emb_r.shape == (Br, HIDDEN) and logit_r.shape == (Br, CLASS_NUM)
    assert jnp.allclose(emb_r, emb_rr, atol=1e-4, rtol=1e-4)
    assert jnp.allclose(logit_r, logit_rr, atol=1e-4, rtol=1e-4)

    # --- bf16 MXU-input path (f32 accumulation): looser tolerance ---
    emb_b, logit_b = jax.block_until_ready(
        classifier_forward(xr, folded, mxu_bf16=True))
    assert jnp.allclose(emb_b, emb_rr, atol=2e-2, rtol=2e-2)
    assert jnp.allclose(logit_b, logit_rr, atol=2e-2, rtol=2e-2)

    print("KERNEL_OK")
</pallas_src>

<mosaic_0001>
module attributes {stable_mosaic.version = 11 : i64} {
  func.func @classifier_kernel(%arg0: i32, %arg1: memref<8x128xf32, #tpu.memory_space<vmem>>, %arg2: memref<128x128xf32, #tpu.memory_space<vmem>>, %arg3: memref<1x128xf32, #tpu.memory_space<vmem>>, %arg4: memref<128x4xf32, #tpu.memory_space<vmem>>, %arg5: memref<1x4xf32, #tpu.memory_space<vmem>>, %arg6: memref<8x100xf32, #tpu.memory_space<vmem>>, %arg7: memref<8x4xf32, #tpu.memory_space<vmem>>) attributes {dimension_semantics = [#tpu.dimension_semantics<parallel>], iteration_bounds = array<i64: 1>, scalar_prefetch = 0 : i64, scratch_operands = 0 : i64, tpu.core_type = #tpu.core_type<tc>, window_params = [{transform_indices = @transform_0, window_bounds = array<i64: 8, 128>}, {pipeline_mode = #tpu.pipeline_mode<synchronous>, transform_indices = @transform_1, window_bounds = array<i64: 128, 128>}, {pipeline_mode = #tpu.pipeline_mode<synchronous>, transform_indices = @transform_2, window_bounds = array<i64: 1, 128>}, {pipeline_mode = #tpu.pipeline_mode<synchronous>, transform_indices = @transform_3, window_bounds = array<i64: 128, 4>}, {pipeline_mode = #tpu.pipeline_mode<synchronous>, transform_indices = @transform_4, window_bounds = array<i64: 1, 4>}, {transform_indices = @transform_5, window_bounds = array<i64: 8, 100>}, {transform_indices = @transform_6, window_bounds = array<i64: 8, 4>}]} {
    %c0 = arith.constant 0 : index
    %c0_0 = arith.constant 0 : index
    %0 = vector.load %arg1[%c0, %c0_0] : memref<8x128xf32, #tpu.memory_space<vmem>>, vector<8x128xf32>
    %c0_1 = arith.constant 0 : index
    %c0_2 = arith.constant 0 : index
    %1 = vector.load %arg2[%c0_1, %c0_2] : memref<128x128xf32, #tpu.memory_space<vmem>>, vector<128x128xf32>
    %cst = arith.constant dense<0.000000e+00> : vector<8x128xf32>
    %2 = tpu.matmul %0, %1, %cst {dimension_numbers = #tpu.dot_dimension_numbers<[1], [0], [0], [1], [0, 0, 1, 1], [], []>} : vector<8x128xf32>, vector<128x128xf32>, vector<8x128xf32> -> vector<8x128xf32>
    %c0_3 = arith.constant 0 : index
    %c0_4 = arith.constant 0 : index
    %3 = vector.load %arg3[%c0_3, %c0_4] : memref<1x128xf32, #tpu.memory_space<vmem>>, vector<1x128xf32>
    %4 = vector.broadcast %3 : vector<1x128xf32> to vector<8x128xf32>
    %5 = arith.addf %2, %4 : vector<8x128xf32>
    %cst_5 = arith.constant 0.000000e+00 : f32
    %6 = vector.broadcast %cst_5 : f32 to vector<8x128xf32>
    %7 = arith.maximumf %5, %6 : vector<8x128xf32>
    %8 = vector.extract_strided_slice %7 {offsets = [0, 0], sizes = [8, 100], strides = [1, 1]} : vector<8x128xf32> to vector<8x100xf32>
    %c0_6 = arith.constant 0 : index
    %c0_7 = arith.constant 0 : index
    %9 = vector.load %arg6[%c0_6, %c0_7] : memref<8x100xf32, #tpu.memory_space<vmem>>, vector<8x100xf32>
    tpu.vector_store %arg6[%c0_6, %c0_7], %8 {strides = array<i32>} : memref<8x100xf32, #tpu.memory_space<vmem>>, vector<8x100xf32>,
    %c0_8 = arith.constant 0 : index
    %c0_9 = arith.constant 0 : index
    %10 = vector.load %arg4[%c0_8, %c0_9] : memref<128x4xf32, #tpu.memory_space<vmem>>, vector<128x4xf32>
    %cst_10 = arith.constant dense<0.000000e+00> : vector<8x4xf32>
    %11 = tpu.matmul %7, %10, %cst_10 {dimension_numbers = #tpu.dot_dimension_numbers<[1], [0], [0], [1], [0, 0, 1, 1], [], []>} : vector<8x128xf32>, vector<128x4xf32>, vector<8x4xf32> -> vector<8x4xf32>
    %c0_11 = arith.constant 0 : index
    %c0_12 = arith.constant 0 : index
    %12 = vector.load %arg5[%c0_11, %c0_12] : memref<1x4xf32, #tpu.memory_space<vmem>>, vector<1x4xf32>
    %13 = vector.broadcast %12 : vector<1x4xf32> to vector<8x4xf32>
    %14 = arith.addf %11, %13 : vector<8x4xf32>
    %c0_13 = arith.constant 0 : index
    %c0_14 = arith.constant 0 : index
    %15 = vector.load %arg7[%c0_13, %c0_14] : memref<8x4xf32, #tpu.memory_space<vmem>>, vector<8x4xf32>
    tpu.vector_store %arg7[%c0_13, %c0_14], %14 {strides = array<i32>} : memref<8x4xf32, #tpu.memory_space<vmem>>, vector<8x4xf32>,
    return
  }
  func.func @transform_0(%arg0: i32) -> (i32, i32) {
    %c0_i32 = arith.constant 0 : i32
    %c0_i32_0 = arith.constant 0 : i32
    return %arg0, %c0_i32 : i32, i32
  }
  func.func @transform_1(%arg0: i32) -> (i32, i32) {
    %c0_i32 = arith.constant 0 : i32
    %c0_i32_0 = arith.constant 0 : i32
    %c0_i32_1 = arith.constant 0 : i32
    return %c0_i32, %c0_i32_0 : i32, i32
  }
  func.func @transform_2(%arg0: i32) -> (i32, i32) {
    %c0_i32 = arith.constant 0 : i32
    %c0_i32_0 = arith.constant 0 : i32
    %c0_i32_1 = arith.constant 0 : i32
    return %c0_i32, %c0_i32_0 : i32, i32
  }
  func.func @transform_3(%arg0: i32) -> (i32, i32) {
    %c0_i32 = arith.constant 0 : i32
    %c0_i32_0 = arith.constant 0 : i32
    %c0_i32_1 = arith.constant 0 : i32
    return %c0_i32, %c0_i32_0 : i32, i32
  }
  func.func @transform_4(%arg0: i32) -> (i32, i32) {
    %c0_i32 = arith.constant 0 : i32
    %c0_i32_0 = arith.constant 0 : i32
    %c0_i32_1 = arith.constant 0 : i32
    return %c0_i32, %c0_i32_0 : i32, i32
  }
  func.func @transform_5(%arg0: i32) -> (i32, i32) {
    %c0_i32 = arith.constant 0 : i32
    %c0_i32_0 = arith.constant 0 : i32
    return %arg0, %c0_i32 : i32, i32
  }
  func.func @transform_6(%arg0: i32) -> (i32, i32) {
    %c0_i32 = arith.constant 0 : i32
    %c0_i32_0 = arith.constant 0 : i32
    return %arg0, %c0_i32 : i32, i32
  }
}

</mosaic_0001>

<llo_original>
// kernel: tpu_custom_call.1
$region0: #{tpu_custom_call.1}
  #allocation0 [shape = 'u32[]', space=smem, size = 0x4, offset = 0x4, fixed_abs, tag = 'smem constant byte address 0x4 - core index']
  #allocation1 [shape = 'u32[144,128]{1,0:T(1,128)}', space=vmem, size = 0x12000, scoped, tag = 'internal scratch']
  %s0 = inlined_call_operand.hbm [shape: f32[8,128], index: 0, kind: input, shape index: {}]
  %s1 = inlined_call_operand.vmem [shape: f32[128,128], index: 1, kind: input, shape index: {}]
  %s2 = inlined_call_operand.vmem [shape: f32[1,128], index: 2, kind: input, shape index: {}]
  %s3 = inlined_call_operand.vmem [shape: f32[128,4], index: 3, kind: input, shape index: {}]
  %s4 = inlined_call_operand.vmem [shape: f32[1,4], index: 4, kind: input, shape index: {}]
  %s5 = inlined_call_operand.hbm [shape: f32[8,100], index: 5, kind: output, shape index: {0}]
  %s6 = inlined_call_operand.vmem [shape: f32[8,4], index: 6, kind: output, shape index: {1}]
  %7 = xla_tuple %s5, %s6
  %s8 = sld [smem:[#allocation0]]
  $region42: #{tpu_custom_call.1} parent=0
    _
  %s10 = ssub.s32 1, %s8
  %s11 = scalar_select 0, %s10, %s8
  $region1: #{tpu_custom_call.1} parent=0
    #allocation2 [shape = 'u8[4096]{0}', space=vmem, size = 0x1000, scoped, tag = 'input window, operand 0, single buffered']
    #allocation3 [shape = 's32[1]{0}', space=sflag, size = 0x4, scoped, tag = 'scoped memory for tpu_custom_call.1']
    #allocation4 [shape = 's32[1]{0}', space=sflag, size = 0x4, scoped, tag = 'scoped memory for tpu_custom_call.1']
    #allocation5 [shape = 'u8[4096]{0}', space=vmem, size = 0x1000, scoped, tag = 'output window, operand 0, single buffered']
    %12 = vsyncpa [#allocation3], 0
    %13 = vsyncpa [#allocation4], 0
    // Predicated region
    $region2: #{tpu_custom_call.1} parent=1 // pred_check
      _
    $region3: #{tpu_custom_call.1} parent=1 // pred_check_branch
      %15 = sbr.rel (0) target = $region5
    $region4: #{tpu_custom_call.1} parent=1 // pred_region
      %s17 = ssub.s32 128, 128
      %18 = vsyncadd [#allocation3], %s17
      %s20 = sshll.u32 [#allocation2], 4
      %s21 = int_to_ptr.vmem [resolvable:$true] %s20
      %23 = dma.hbm_to_vmem [thread:$0]  %s0, 128, %s21, [#allocation3]
    $region5: #{tpu_custom_call.1} parent=1 // pred_fallthru
      _
    // Predicated region
    $region6: #{tpu_custom_call.1} parent=1 // pred_check
      _
    $region7: #{tpu_custom_call.1} parent=1 // pred_check_branch
      %25 = sbr.rel (0) target = $region9
    $region8: #{tpu_custom_call.1} parent=1 // pred_region
      _
    $region9: #{tpu_custom_call.1} parent=1 // pred_fallthru
      _
    // Predicated region
    $region10: #{tpu_custom_call.1} parent=1 // pred_check
      _
    $region11: #{tpu_custom_call.1} parent=1 // pred_check_branch
      %27 = sbr.rel (0) target = $region13
    $region12: #{tpu_custom_call.1} parent=1 // pred_region
      _
    $region13: #{tpu_custom_call.1} parent=1 // pred_fallthru
      _
    // Predicated region
    $region14: #{tpu_custom_call.1} parent=1 // pred_check
      _
    $region15: #{tpu_custom_call.1} parent=1 // pred_check_branch
      %29 = sbr.rel (0) target = $region17
    $region16: #{tpu_custom_call.1} parent=1 // pred_region
      _
    $region17: #{tpu_custom_call.1} parent=1 // pred_fallthru
      _
    // Predicated region
    $region18: #{tpu_custom_call.1} parent=1 // pred_check
      _
    $region19: #{tpu_custom_call.1} parent=1 // pred_check_branch
      %31 = sbr.rel (0) target = $region21
    $region20: #{tpu_custom_call.1} parent=1 // pred_region
      _
    $region21: #{tpu_custom_call.1} parent=1 // pred_fallthru
      _
    // Predicated region
    $region22: #{tpu_custom_call.1} parent=1 // pred_check
      _
    $region23: #{tpu_custom_call.1} parent=1 // pred_check_branch
      %33 = sbr.rel (0) target = $region25
    $region24: #{tpu_custom_call.1} parent=1 // pred_region
      %34 = dma.done [#allocation3], 128
    $region25: #{tpu_custom_call.1} parent=1 // pred_fallthru
      _
    %v35 = vld [vmem:[#allocation2] sm:$0xff]
    %v36 = vld [vmem:[%s1] sm:$0xff]
    %v37 = vld [vmem:[%s1 + $0x8] sm:$0xff]
    %v38 = vld [vmem:[%s1 + $0x10] sm:$0xff]
    %v39 = vld [vmem:[%s1 + $0x18] sm:$0xff]
    %v40 = vld [vmem:[%s1 + $0x20] sm:$0xff]
    %v41 = vld [vmem:[%s1 + $0x28] sm:$0xff]
    %v42 = vld [vmem:[%s1 + $0x30] sm:$0xff]
    %v43 = vld [vmem:[%s1 + $0x38] sm:$0xff]
    %v44 = vld [vmem:[%s1 + $0x40] sm:$0xff]
    %v45 = vld [vmem:[%s1 + $0x48] sm:$0xff]
    %v46 = vld [vmem:[%s1 + $0x50] sm:$0xff]
    %v47 = vld [vmem:[%s1 + $0x58] sm:$0xff]
    %v48 = vld [vmem:[%s1 + $0x60] sm:$0xff]
    %v49 = vld [vmem:[%s1 + $0x68] sm:$0xff]
    %v50 = vld [vmem:[%s1 + $0x70] sm:$0xff]
    %v51 = vld [vmem:[%s1 + $0x78] sm:$0xff]
    %v52 = vld [vmem:[%s2] sm:$0x1]
    %v54 = vlaneseq
    %v55 = vshrl.u32 %v54, 7
    %v56 = vsub.s32 0, %v55
    %v57 = vrot.slane %v52, %v56
    %59 = vmatprep.subr.mxu0 0.0
    %60 = vmatpush1.msra.mxu0 %v36
    %61 = vmatprep.subr.mxu0 0.0
    %62 = vmatpush1.msra.mxu0 %v37
    %63 = vmatprep.subr.mxu0 0.0
    %64 = vmatpush1.msra.mxu0 %v38
    %65 = vmatprep.subr.mxu0 0.0
    %66 = vmatpush1.msra.mxu0 %v39
    %67 = vmatprep.subr.mxu0 0.0
    %68 = vmatpush1.msra.mxu0 %v40
    %69 = vmatprep.subr.mxu0 0.0
    %70 = vmatpush1.msra.mxu0 %v41
    %71 = vmatprep.subr.mxu0 0.0
    %72 = vmatpush1.msra.mxu0 %v42
    %73 = vmatprep.subr.mxu0 0.0
    %74 = vmatpush1.msra.mxu0 %v43
    %75 = vmatprep.subr.mxu0 0.0
    %76 = vmatpush1.msra.mxu0 %v44
    %77 = vmatprep.subr.mxu0 0.0
    %78 = vmatpush1.msra.mxu0 %v45
    %79 = vmatprep.subr.mxu0 0.0
    %80 = vmatpush1.msra.mxu0 %v46
    %81 = vmatprep.subr.mxu0 0.0
    %82 = vmatpush1.msra.mxu0 %v47
    %83 = vmatprep.subr.mxu0 0.0
    %84 = vmatpush1.msra.mxu0 %v48
    %85 = vmatprep.subr.mxu0 0.0
    %86 = vmatpush1.msra.mxu0 %v49
    %87 = vmatprep.subr.mxu0 0.0
    %88 = vmatpush1.msra.mxu0 %v50
    %89 = vmatprep.subr.mxu0 0.0
    %90 = vmatpush1.msra.mxu0 %v51
    %91 = vmatprep.subr.mxu0 0.0
    %92 = vmatpush1.msra.mxu0 0.0
    %93 = vmatprep.subr.mxu0 0.0
    %94 = vmatpush1.msra.mxu0 0.0
    %95 = vmatprep.subr.mxu0 0.0
    %96 = vmatpush1.msra.mxu0 0.0
    %97 = vmatprep.subr.mxu0 0.0
    %98 = vmatpush1.msra.mxu0 0.0
    %99 = vmatprep.subr.mxu0 0.0
    %100 = vmatpush1.msra.mxu0 0.0
    %101 = vmatprep.subr.mxu0 0.0
    %102 = vmatpush1.msra.mxu0 0.0
    %103 = vmatprep.subr.mxu0 0.0
    %104 = vmatpush1.msra.mxu0 0.0
    %105 = vmatprep.subr.mxu0 0.0
    %106 = vmatpush1.msra.mxu0 0.0
    %107 = vmatprep.subr.mxu0 0.0
    %108 = vmatpush1.msra.mxu0 0.0
    %109 = vmatprep.subr.mxu0 0.0
    %110 = vmatpush1.msra.mxu0 0.0
    %111 = vmatprep.subr.mxu0 0.0
    %112 = vmatpush1.msra.mxu0 0.0
    %113 = vmatprep.subr.mxu0 0.0
    %114 = vmatpush1.msra.mxu0 0.0
    %115 = vmatprep.subr.mxu0 0.0
    %116 = vmatpush1.msra.mxu0 0.0
    %117 = vmatprep.subr.mxu0 0.0
    %118 = vmatpush1.msra.mxu0 0.0
    %119 = vmatprep.subr.mxu0 0.0
    %120 = vmatpush1.msra.mxu0 0.0
    %121 = vmatprep.subr.mxu0 0.0
    %122 = vmatpush1.msra.mxu0 0.0
    %123 = vmatprep.mubr.f32.mxu0 0.0
    %124 = vmatmul.mubr.f32.gmra.mrb[0].mxu0 %v35
    %v125 = vpop.f32.mrb[0].mxu0
    %v126 = vadd.f32 %v57, %v125
    %v127 = vpop.f32.mrb[0].mxu0
    %128 = vdwg.mxu0
    %v129 = vmax.f32 %v126, 0.0
    %vm130 = vcmask 818176
    %131 = vst.msk [vmem:[#allocation5] sm:$0xff] %vm130, %v129
    %v132 = vld [vmem:[%s3] sm:$0xff]
    %v133 = vld [vmem:[%s3 + $0x8] sm:$0xff]
    %v134 = vld [vmem:[%s3 + $0x10] sm:$0xff]
    %v135 = vld [vmem:[%s3 + $0x18] sm:$0xff]
    %v136 = vld [vmem:[%s3 + $0x20] sm:$0xff]
    %v137 = vld [vmem:[%s3 + $0x28] sm:$0xff]
    %v138 = vld [vmem:[%s3 + $0x30] sm:$0xff]
    %v139 = vld [vmem:[%s3 + $0x38] sm:$0xff]
    %v140 = vld [vmem:[%s3 + $0x40] sm:$0xff]
    %v141 = vld [vmem:[%s3 + $0x48] sm:$0xff]
    %v142 = vld [vmem:[%s3 + $0x50] sm:$0xff]
    %v143 = vld [vmem:[%s3 + $0x58] sm:$0xff]
    %v144 = vld [vmem:[%s3 + $0x60] sm:$0xff]
    %v145 = vld [vmem:[%s3 + $0x68] sm:$0xff]
    %v146 = vld [vmem:[%s3 + $0x70] sm:$0xff]
    %v147 = vld [vmem:[%s3 + $0x78] sm:$0xff]
    %v148 = vld [vmem:[%s4] sm:$0x1]
    %v150 = vlaneseq
    %v151 = vshrl.u32 %v150, 7
    %v152 = vsub.s32 0, %v151
    %v153 = vrot.slane %v148, %v152
    %155 = vmatprep.subr.mxu0 0.0
    %156 = vmatpush1.msra.mxu0 %v132
    %157 = vmatprep.subr.mxu0 0.0
    %158 = vmatpush1.msra.mxu0 %v133
    %159 = vmatprep.subr.mxu0 0.0
    %160 = vmatpush1.msra.mxu0 %v134
    %161 = vmatprep.subr.mxu0 0.0
    %162 = vmatpush1.msra.mxu0 %v135
    %163 = vmatprep.subr.mxu0 0.0
    %164 = vmatpush1.msra.mxu0 %v136
    %165 = vmatprep.subr.mxu0 0.0
    %166 = vmatpush1.msra.mxu0 %v137
    %167 = vmatprep.subr.mxu0 0.0
    %168 = vmatpush1.msra.mxu0 %v138
    %169 = vmatprep.subr.mxu0 0.0
    %170 = vmatpush1.msra.mxu0 %v139
    %171 = vmatprep.subr.mxu0 0.0
    %172 = vmatpush1.msra.mxu0 %v140
    %173 = vmatprep.subr.mxu0 0.0
    %174 = vmatpush1.msra.mxu0 %v141
    %175 = vmatprep.subr.mxu0 0.0
    %176 = vmatpush1.msra.mxu0 %v142
    %177 = vmatprep.subr.mxu0 0.0
    %178 = vmatpush1.msra.mxu0 %v143
    %179 = vmatprep.subr.mxu0 0.0
    %180 = vmatpush1.msra.mxu0 %v144
    %181 = vmatprep.subr.mxu0 0.0
    %182 = vmatpush1.msra.mxu0 %v145
    %183 = vmatprep.subr.mxu0 0.0
    %184 = vmatpush1.msra.mxu0 %v146
    %185 = vmatprep.subr.mxu0 0.0
    %186 = vmatpush1.msra.mxu0 %v147
    %187 = vmatprep.subr.mxu0 0.0
    %188 = vmatpush1.msra.mxu0 0.0
    %189 = vmatprep.subr.mxu0 0.0
    %190 = vmatpush1.msra.mxu0 0.0
    %191 = vmatprep.subr.mxu0 0.0
    %192 = vmatpush1.msra.mxu0 0.0
    %193 = vmatprep.subr.mxu0 0.0
    %194 = vmatpush1.msra.mxu0 0.0
    %195 = vmatprep.subr.mxu0 0.0
    %196 = vmatpush1.msra.mxu0 0.0
    %197 = vmatprep.subr.mxu0 0.0
    %198 = vmatpush1.msra.mxu0 0.0
    %199 = vmatprep.subr.mxu0 0.0
    %200 = vmatpush1.msra.mxu0 0.0
    %201 = vmatprep.subr.mxu0 0.0
    %202 = vmatpush1.msra.mxu0 0.0
    %203 = vmatprep.subr.mxu0 0.0
    %204 = vmatpush1.msra.mxu0 0.0
    %205 = vmatprep.subr.mxu0 0.0
    %206 = vmatpush1.msra.mxu0 0.0
    %207 = vmatprep.subr.mxu0 0.0
    %208 = vmatpush1.msra.mxu0 0.0
    %209 = vmatprep.subr.mxu0 0.0
    %210 = vmatpush1.msra.mxu0 0.0
    %211 = vmatprep.subr.mxu0 0.0
    %212 = vmatpush1.msra.mxu0 0.0
    %213 = vmatprep.subr.mxu0 0.0
    %214 = vmatpush1.msra.mxu0 0.0
    %215 = vmatprep.subr.mxu0 0.0
    %216 = vmatpush1.msra.mxu0 0.0
    %217 = vmatprep.subr.mxu0 0.0
    %218 = vmatpush1.msra.mxu0 0.0
    %219 = vmatprep.mubr.f32.mxu0 0.0
    %220 = vmatmul.mubr.f32.gmra.mrb[0].mxu0 %v129
    %v221 = vpop.f32.mrb[0].mxu0
    %v222 = vadd.f32 %v153, %v221
    %v223 = vpop.f32.mrb[0].mxu0
    %224 = vdwg.mxu0
    %vm225 = vcmask 31744
    %226 = vst.msk [vmem:[%s6] sm:$0xff] %vm225, %v222
    // Predicated region
    $region26: #{tpu_custom_call.1} parent=1 // pred_check
      _
    $region27: #{tpu_custom_call.1} parent=1 // pred_check_branch
      %228 = sbr.rel (0) target = $region29
    $region28: #{tpu_custom_call.1} parent=1 // pred_region
      %s230 = ssub.s32 128, 128
      %231 = vsyncadd [#allocation4], %s230
      %s233 = sshll.u32 [#allocation5], 4
      %s234 = int_to_ptr.vmem [resolvable:$true] %s233
      %236 = dma.vmem_to_hbm [thread:$0]  %s234, 128, %s5, [#allocation4]
    $region29: #{tpu_custom_call.1} parent=1 // pred_fallthru
      _
    // Predicated region
    $region30: #{tpu_custom_call.1} parent=1 // pred_check
      _
    $region31: #{tpu_custom_call.1} parent=1 // pred_check_branch
      %238 = sbr.rel (0) target = $region33
    $region32: #{tpu_custom_call.1} parent=1 // pred_region
      _
    $region33: #{tpu_custom_call.1} parent=1 // pred_fallthru
      _
    // Predicated region
    $region34: #{tpu_custom_call.1} parent=1 // pred_check
      _
    $region35: #{tpu_custom_call.1} parent=1 // pred_check_branch
      %240 = sbr.rel (0) target = $region37
    $region36: #{tpu_custom_call.1} parent=1 // pred_region
      %241 = dma.done [#allocation4], 128
    $region37: #{tpu_custom_call.1} parent=1 // pred_fallthru
      _
    // Predicated region
    $region38: #{tpu_custom_call.1} parent=1 // pred_check
      _
    $region39: #{tpu_custom_call.1} parent=1 // pred_check_branch
      %243 = sbr.rel (0) target = $region41
    $region40: #{tpu_custom_call.1} parent=1 // pred_region
      _
    $region41: #{tpu_custom_call.1} parent=1 // pred_fallthru
      _
    %244 = vsyncpa [#allocation3], 1
    %245 = vsyncpa [#allocation4], 1

</llo_original>
